<compile_context>
chip_gen: v7x
topology: tpu7x:2x2x1
jax: 0.10.0
libtpu: 0.0.40
codegen_flags: <defaults>
</compile_context>

<pallas_src>
import functools

import jax
import jax.numpy as jnp
from jax.experimental import pallas as pl
from jax.experimental.pallas import tpu as pltpu

HIDDEN = 128  # hypernet hidden width (matches the reference module); lane-dense.


def _hyper_radial_flow_kernel(nd, nflows,
                              cond_ref, x_ref, logpx_ref,
                              w1_ref, b1_ref, w2_ref, b2_ref,
                              w3z_ref, b3z_ref,
                              w3la_ref, b3la_ref,
                              w3b_ref, b3b_ref,
                              f_ref, logpy_ref):
    f32 = jnp.float32

    # ---------------- hypernetwork MLP (MXU matmuls, lane-dense hidden = 128) --------
    h = jnp.dot(cond_ref[...].astype(f32), w1_ref[...].astype(f32),
                preferred_element_type=f32) + b1_ref[...]
    h = jnp.maximum(h, 0.0)
    h = jnp.dot(h, w2_ref[...].astype(f32), preferred_element_type=f32) + b2_ref[...]
    h = jnp.maximum(h, 0.0)                                              # [B, 128]

    z = x_ref[...].astype(f32)                                           # [B, nd]
    lp = logpx_ref[...].astype(f32)                                      # [B, 1]

    # ---------------- nflows radial-flow updates (static unroll, nflows small) -------
    for i in range(nflows):
        # z0 head: [B, nd] on the MXU; scalar heads: VPU multiply + XLU lane reduce.
        z0 = jnp.dot(h, w3z_ref[i], preferred_element_type=f32) + b3z_ref[i]
        log_alpha = (jnp.sum(h * w3la_ref[i], axis=-1, keepdims=True)
                     + b3la_ref[i]) - 6.0                                # [B, 1]
        beta_raw = (jnp.sum(h * w3b_ref[i], axis=-1, keepdims=True)
                    + b3b_ref[i]) - 6.0                                  # [B, 1]

        alpha = jnp.exp(log_alpha)                                       # [B, 1]
        # numerically stable softplus: max(x,0) + log1p(exp(-|x|))
        sp = jnp.maximum(beta_raw, 0.0) + jnp.log1p(jnp.exp(-jnp.abs(beta_raw)))
        beta = sp - alpha                                                # [B, 1]

        diff = z - z0                                                    # [B, nd]
        r = jnp.sqrt(jnp.sum(diff * diff, axis=-1, keepdims=True))       # [B, 1]
        denom = alpha + r
        hr = 1.0 / denom                                                 # [B, 1]
        bh = beta * hr                                                   # [B, 1]

        z = z + bh * diff
        logdet = ((nd - 1) * jnp.log1p(bh)
                  + jnp.log(1.0 + bh - beta * r / (denom * denom)))      # [B, 1]
        lp = lp - logdet

    f_ref[...] = z.astype(f_ref.dtype)
    logpy_ref[...] = lp.astype(logpy_ref.dtype)


def hypernetwork_radial_flow(x, logpx, cond, params, *, nd, nflows):
    """Forward pass of HypernetworkRadialFlow (logpx path). Returns (f, logpy)."""
    B = x.shape[0]
    H = HIDDEN
    w1, b1 = params["w1"], params["b1"]
    w2, b2 = params["w2"], params["b2"]
    w3, b3 = params["w3"], params["b3"]

    # Pre-split the last hypernet layer per flow so the kernel never slices at
    # unaligned lane offsets.  (Tiny [H, (nd+2)*nflows] tensors; trivial XLA ops.)
    w3r = w3.reshape(H, nflows, nd + 2)                       # col j = i*(nd+2)+k
    b3r = b3.reshape(nflows, nd + 2)
    w3z = jnp.transpose(w3r[:, :, :nd], (1, 0, 2))            # [nflows, H, nd]
    b3z = b3r[:, :nd].reshape(nflows, 1, nd)                  # [nflows, 1, nd]
    w3la = jnp.transpose(w3r[:, :, nd]).reshape(nflows, 1, H)  # [nflows, 1, H]
    b3la = b3r[:, nd].reshape(nflows, 1, 1)
    w3b = jnp.transpose(w3r[:, :, nd + 1]).reshape(nflows, 1, H)
    b3b = b3r[:, nd + 1].reshape(nflows, 1, 1)

    logpx2d = logpx.reshape(B, 1).astype(jnp.float32)

    vmem = lambda: pl.BlockSpec(memory_space=pltpu.MemorySpace.VMEM)
    kernel = functools.partial(_hyper_radial_flow_kernel, nd, nflows)

    # Single grid-less invocation: all operands stay VMEM-resident for the whole call.
    f, logpy2d = pl.pallas_call(
        kernel,
        out_shape=(jax.ShapeDtypeStruct((B, nd), x.dtype),
                   jax.ShapeDtypeStruct((B, 1), jnp.float32)),
        in_specs=[vmem() for _ in range(13)],
        out_specs=(vmem(), vmem()),
    )(cond, x, logpx2d, w1, b1, w2, b2, w3z, b3z, w3la, b3la, w3b, b3b)

    return f, logpy2d.reshape(B)


def reference_forward(x, logpx, cond, params, *, nd, nflows):
    """Pure-JAX mirror of the PyTorch HypernetworkRadialFlow forward (logpx path)."""
    hp = jax.lax.Precision.HIGHEST
    h = jax.nn.relu(jnp.dot(cond, params["w1"], precision=hp) + params["b1"])
    h = jax.nn.relu(jnp.dot(h, params["w2"], precision=hp) + params["b2"])
    hyper = jnp.dot(h, params["w3"], precision=hp) + params["b3"]
    z, lp = x, logpx
    for i in range(nflows):
        s = (nd + 2) * i
        z0 = hyper[:, s:s + nd]
        log_alpha = hyper[:, s + nd:s + nd + 1] - 6.0
        beta = -jnp.exp(log_alpha) + jax.nn.softplus(hyper[:, s + nd + 1:s + nd + 2] - 6.0)
        diff = z - z0
        r = jnp.linalg.norm(diff, axis=-1, keepdims=True)
        hh = 1.0 / (jnp.exp(log_alpha) + r)
        z = z + beta * hh * diff
        logdet = ((nd - 1) * jnp.log(1.0 + beta * hh)
                  + jnp.log(1.0 + beta * hh - beta * r / (jnp.exp(log_alpha) + r) ** 2))
        lp = lp - logdet.reshape(-1)
    return z, lp


if __name__ == "__main__":
    B, ND, COND_DIM, NFLOWS = 8, 4, 16, 2
    P = (ND + 2) * NFLOWS

    key = jax.random.PRNGKey(0)
    ks = jax.random.split(key, 9)
    x = jax.random.normal(ks[0], (B, ND), jnp.float32)
    cond = jax.random.normal(ks[1], (B, COND_DIM), jnp.float32)
    logpx = jax.random.normal(ks[2], (B,), jnp.float32)

    params = {
        "w1": jax.random.normal(ks[3], (COND_DIM, HIDDEN), jnp.float32) / jnp.sqrt(COND_DIM * 1.0),
        "b1": 0.1 * jax.random.normal(ks[4], (1, HIDDEN), jnp.float32),
        "w2": jax.random.normal(ks[5], (HIDDEN, HIDDEN), jnp.float32) / jnp.sqrt(HIDDEN * 1.0),
        "b2": 0.1 * jax.random.normal(ks[6], (1, HIDDEN), jnp.float32),
        "w3": jax.random.normal(ks[7], (HIDDEN, P), jnp.float32) / jnp.sqrt(HIDDEN * 1.0),
        # Larger last-layer bias so the flow correction and log-det are well above
        # numerical noise in the check below (the -6.0 offsets otherwise dwarf them).
        "b3": 3.0 * jax.random.normal(ks[8], (1, P), jnp.float32),
    }

    fwd = jax.jit(functools.partial(hypernetwork_radial_flow, nd=ND, nflows=NFLOWS))
    f, logpy = fwd(x, logpx, cond, params)
    f = jax.block_until_ready(f)
    logpy = jax.block_until_ready(logpy)

    f_ref, lp_ref = reference_forward(x, logpx, cond, params, nd=ND, nflows=NFLOWS)

    assert f.shape == x.shape and f.dtype == x.dtype
    assert logpy.shape == logpx.shape
    assert jnp.allclose(f, f_ref, atol=2e-3, rtol=2e-3), float(jnp.max(jnp.abs(f - f_ref)))
    assert jnp.allclose(logpy, lp_ref, atol=2e-3, rtol=2e-3), float(jnp.max(jnp.abs(logpy - lp_ref)))

    print("KERNEL_OK")
</pallas_src>

<mosaic_0001>
module attributes {stable_mosaic.version = 11 : i64} {
  func.func @_hyper_radial_flow_kernel(%arg0: memref<8x16xf32, #tpu.memory_space<vmem>>, %arg1: memref<8x4xf32, #tpu.memory_space<vmem>>, %arg2: memref<8x1xf32, #tpu.memory_space<vmem>>, %arg3: memref<16x128xf32, #tpu.memory_space<vmem>>, %arg4: memref<1x128xf32, #tpu.memory_space<vmem>>, %arg5: memref<128x128xf32, #tpu.memory_space<vmem>>, %arg6: memref<1x128xf32, #tpu.memory_space<vmem>>, %arg7: memref<2x128x4xf32, #tpu.memory_space<vmem>>, %arg8: memref<2x1x4xf32, #tpu.memory_space<vmem>>, %arg9: memref<2x1x128xf32, #tpu.memory_space<vmem>>, %arg10: memref<2x1x1xf32, #tpu.memory_space<vmem>>, %arg11: memref<2x1x128xf32, #tpu.memory_space<vmem>>, %arg12: memref<2x1x1xf32, #tpu.memory_space<vmem>>, %arg13: memref<8x4xf32, #tpu.memory_space<vmem>>, %arg14: memref<8x1xf32, #tpu.memory_space<vmem>>) attributes {dimension_semantics = [], scalar_prefetch = 0 : i64, scratch_operands = 0 : i64, tpu.core_type = #tpu.core_type<tc>} {
    %c0 = arith.constant 0 : index
    %c0_0 = arith.constant 0 : index
    %0 = vector.load %arg0[%c0, %c0_0] : memref<8x16xf32, #tpu.memory_space<vmem>>, vector<8x16xf32>
    %c0_1 = arith.constant 0 : index
    %c0_2 = arith.constant 0 : index
    %1 = vector.load %arg3[%c0_1, %c0_2] : memref<16x128xf32, #tpu.memory_space<vmem>>, vector<16x128xf32>
    %cst = arith.constant dense<0.000000e+00> : vector<8x128xf32>
    %2 = tpu.matmul %0, %1, %cst {dimension_numbers = #tpu.dot_dimension_numbers<[1], [0], [0], [1], [0, 0, 1, 1], [], []>} : vector<8x16xf32>, vector<16x128xf32>, vector<8x128xf32> -> vector<8x128xf32>
    %c0_3 = arith.constant 0 : index
    %c0_4 = arith.constant 0 : index
    %3 = vector.load %arg4[%c0_3, %c0_4] : memref<1x128xf32, #tpu.memory_space<vmem>>, vector<1x128xf32>
    %4 = vector.broadcast %3 : vector<1x128xf32> to vector<8x128xf32>
    %5 = arith.addf %2, %4 : vector<8x128xf32>
    %cst_5 = arith.constant 0.000000e+00 : f32
    %6 = vector.broadcast %cst_5 : f32 to vector<8x128xf32>
    %7 = arith.maximumf %5, %6 : vector<8x128xf32>
    %c0_6 = arith.constant 0 : index
    %c0_7 = arith.constant 0 : index
    %8 = vector.load %arg5[%c0_6, %c0_7] : memref<128x128xf32, #tpu.memory_space<vmem>>, vector<128x128xf32>
    %cst_8 = arith.constant dense<0.000000e+00> : vector<8x128xf32>
    %9 = tpu.matmul %7, %8, %cst_8 {dimension_numbers = #tpu.dot_dimension_numbers<[1], [0], [0], [1], [0, 0, 1, 1], [], []>} : vector<8x128xf32>, vector<128x128xf32>, vector<8x128xf32> -> vector<8x128xf32>
    %c0_9 = arith.constant 0 : index
    %c0_10 = arith.constant 0 : index
    %10 = vector.load %arg6[%c0_9, %c0_10] : memref<1x128xf32, #tpu.memory_space<vmem>>, vector<1x128xf32>
    %11 = vector.broadcast %10 : vector<1x128xf32> to vector<8x128xf32>
    %12 = arith.addf %9, %11 : vector<8x128xf32>
    %cst_11 = arith.constant 0.000000e+00 : f32
    %13 = vector.broadcast %cst_11 : f32 to vector<8x128xf32>
    %14 = arith.maximumf %12, %13 : vector<8x128xf32>
    %c0_12 = arith.constant 0 : index
    %c0_13 = arith.constant 0 : index
    %15 = vector.load %arg1[%c0_12, %c0_13] : memref<8x4xf32, #tpu.memory_space<vmem>>, vector<8x4xf32>
    %c0_14 = arith.constant 0 : index
    %c0_15 = arith.constant 0 : index
    %16 = vector.load %arg2[%c0_14, %c0_15] : memref<8x1xf32, #tpu.memory_space<vmem>>, vector<8x1xf32>
    %c0_16 = arith.constant 0 : index
    %c0_17 = arith.constant 0 : index
    %c0_18 = arith.constant 0 : index
    %17 = vector.load %arg7[%c0_16, %c0_17, %c0_18] : memref<2x128x4xf32, #tpu.memory_space<vmem>>, vector<1x128x4xf32>
    %18 = vector.shape_cast %17 : vector<1x128x4xf32> to vector<128x4xf32>
    %cst_19 = arith.constant dense<0.000000e+00> : vector<8x4xf32>
    %19 = tpu.matmul %14, %18, %cst_19 {dimension_numbers = #tpu.dot_dimension_numbers<[1], [0], [0], [1], [0, 0, 1, 1], [], []>} : vector<8x128xf32>, vector<128x4xf32>, vector<8x4xf32> -> vector<8x4xf32>
    %c0_20 = arith.constant 0 : index
    %c0_21 = arith.constant 0 : index
    %c0_22 = arith.constant 0 : index
    %20 = vector.load %arg8[%c0_20, %c0_21, %c0_22] : memref<2x1x4xf32, #tpu.memory_space<vmem>>, vector<1x1x4xf32>
    %21 = vector.shape_cast %20 : vector<1x1x4xf32> to vector<1x4xf32>
    %22 = vector.broadcast %21 : vector<1x4xf32> to vector<8x4xf32>
    %23 = arith.addf %19, %22 : vector<8x4xf32>
    %c0_23 = arith.constant 0 : index
    %c0_24 = arith.constant 0 : index
    %c0_25 = arith.constant 0 : index
    %24 = vector.load %arg9[%c0_23, %c0_24, %c0_25] : memref<2x1x128xf32, #tpu.memory_space<vmem>>, vector<1x1x128xf32>
    %25 = vector.shape_cast %24 : vector<1x1x128xf32> to vector<1x128xf32>
    %26 = vector.broadcast %25 : vector<1x128xf32> to vector<8x128xf32>
    %27 = arith.mulf %14, %26 : vector<8x128xf32>
    %cst_26 = arith.constant dense<0.000000e+00> : vector<8xf32>
    %28 = vector.multi_reduction <add>, %27, %cst_26 [1] : vector<8x128xf32> to vector<8xf32>
    %29 = vector.shape_cast %28 : vector<8xf32> to vector<8x1xf32>
    %c0_27 = arith.constant 0 : index
    %c0_28 = arith.constant 0 : index
    %c0_29 = arith.constant 0 : index
    %30 = vector.load %arg10[%c0_27, %c0_28, %c0_29] : memref<2x1x1xf32, #tpu.memory_space<vmem>>, vector<1x1x1xf32>
    %31 = vector.shape_cast %30 : vector<1x1x1xf32> to vector<1x1xf32>
    %32 = vector.broadcast %31 : vector<1x1xf32> to vector<8x1xf32>
    %33 = arith.addf %29, %32 : vector<8x1xf32>
    %cst_30 = arith.constant 6.000000e+00 : f32
    %34 = vector.broadcast %cst_30 : f32 to vector<8x1xf32>
    %35 = arith.subf %33, %34 : vector<8x1xf32>
    %c0_31 = arith.constant 0 : index
    %c0_32 = arith.constant 0 : index
    %c0_33 = arith.constant 0 : index
    %36 = vector.load %arg11[%c0_31, %c0_32, %c0_33] : memref<2x1x128xf32, #tpu.memory_space<vmem>>, vector<1x1x128xf32>
    %37 = vector.shape_cast %36 : vector<1x1x128xf32> to vector<1x128xf32>
    %38 = vector.broadcast %37 : vector<1x128xf32> to vector<8x128xf32>
    %39 = arith.mulf %14, %38 : vector<8x128xf32>
    %cst_34 = arith.constant dense<0.000000e+00> : vector<8xf32>
    %40 = vector.multi_reduction <add>, %39, %cst_34 [1] : vector<8x128xf32> to vector<8xf32>
    %41 = vector.shape_cast %40 : vector<8xf32> to vector<8x1xf32>
    %c0_35 = arith.constant 0 : index
    %c0_36 = arith.constant 0 : index
    %c0_37 = arith.constant 0 : index
    %42 = vector.load %arg12[%c0_35, %c0_36, %c0_37] : memref<2x1x1xf32, #tpu.memory_space<vmem>>, vector<1x1x1xf32>
    %43 = vector.shape_cast %42 : vector<1x1x1xf32> to vector<1x1xf32>
    %44 = vector.broadcast %43 : vector<1x1xf32> to vector<8x1xf32>
    %45 = arith.addf %41, %44 : vector<8x1xf32>
    %cst_38 = arith.constant 6.000000e+00 : f32
    %46 = vector.broadcast %cst_38 : f32 to vector<8x1xf32>
    %47 = arith.subf %45, %46 : vector<8x1xf32>
    %48 = math.exp %35 : vector<8x1xf32>
    %cst_39 = arith.constant 0.000000e+00 : f32
    %49 = vector.broadcast %cst_39 : f32 to vector<8x1xf32>
    %50 = arith.maximumf %47, %49 : vector<8x1xf32>
    %51 = math.absf %47 : vector<8x1xf32>
    %cst_40 = arith.constant 0.000000e+00 : f32
    %52 = vector.broadcast %cst_40 : f32 to vector<8x1xf32>
    %53 = arith.subf %52, %51 : vector<8x1xf32>
    %54 = math.exp %53 : vector<8x1xf32>
    %55 = math.log1p %54 : vector<8x1xf32>
    %56 = arith.addf %50, %55 : vector<8x1xf32>
    %57 = arith.subf %56, %48 : vector<8x1xf32>
    %58 = arith.subf %15, %23 : vector<8x4xf32>
    %59 = arith.mulf %58, %58 : vector<8x4xf32>
    %cst_41 = arith.constant dense<0.000000e+00> : vector<8xf32>
    %60 = vector.multi_reduction <add>, %59, %cst_41 [1] : vector<8x4xf32> to vector<8xf32>
    %61 = vector.shape_cast %60 : vector<8xf32> to vector<8x1xf32>
    %62 = math.sqrt %61 : vector<8x1xf32>
    %63 = arith.addf %48, %62 : vector<8x1xf32>
    %cst_42 = arith.constant 1.000000e+00 : f32
    %64 = vector.broadcast %cst_42 : f32 to vector<8x1xf32>
    %65 = arith.divf %64, %63 : vector<8x1xf32>
    %66 = arith.mulf %57, %65 : vector<8x1xf32>
    %67 = vector.broadcast %66 : vector<8x1xf32> to vector<8x4xf32>
    %68 = arith.mulf %67, %58 : vector<8x4xf32>
    %69 = arith.addf %15, %68 : vector<8x4xf32>
    %70 = math.log1p %66 : vector<8x1xf32>
    %cst_43 = arith.constant 3.000000e+00 : f32
    %71 = vector.broadcast %cst_43 : f32 to vector<8x1xf32>
    %72 = arith.mulf %71, %70 : vector<8x1xf32>
    %cst_44 = arith.constant 1.000000e+00 : f32
    %73 = vector.broadcast %cst_44 : f32 to vector<8x1xf32>
    %74 = arith.addf %73, %66 : vector<8x1xf32>
    %75 = arith.mulf %57, %62 : vector<8x1xf32>
    %76 = arith.mulf %63, %63 : vector<8x1xf32>
    %77 = arith.divf %75, %76 : vector<8x1xf32>
    %78 = arith.subf %74, %77 : vector<8x1xf32>
    %79 = math.log %78 : vector<8x1xf32>
    %80 = arith.addf %72, %79 : vector<8x1xf32>
    %81 = arith.subf %16, %80 : vector<8x1xf32>
    %c1 = arith.constant 1 : index
    %c0_45 = arith.constant 0 : index
    %c0_46 = arith.constant 0 : index
    %82 = vector.load %arg7[%c1, %c0_45, %c0_46] : memref<2x128x4xf32, #tpu.memory_space<vmem>>, vector<1x128x4xf32>
    %83 = vector.shape_cast %82 : vector<1x128x4xf32> to vector<128x4xf32>
    %cst_47 = arith.constant dense<0.000000e+00> : vector<8x4xf32>
    %84 = tpu.matmul %14, %83, %cst_47 {dimension_numbers = #tpu.dot_dimension_numbers<[1], [0], [0], [1], [0, 0, 1, 1], [], []>} : vector<8x128xf32>, vector<128x4xf32>, vector<8x4xf32> -> vector<8x4xf32>
    %c1_48 = arith.constant 1 : index
    %c0_49 = arith.constant 0 : index
    %c0_50 = arith.constant 0 : index
    %85 = vector.load %arg8[%c1_48, %c0_49, %c0_50] : memref<2x1x4xf32, #tpu.memory_space<vmem>>, vector<1x1x4xf32>
    %86 = vector.shape_cast %85 : vector<1x1x4xf32> to vector<1x4xf32>
    %87 = vector.broadcast %86 : vector<1x4xf32> to vector<8x4xf32>
    %88 = arith.addf %84, %87 : vector<8x4xf32>
    %c1_51 = arith.constant 1 : index
    %c0_52 = arith.constant 0 : index
    %c0_53 = arith.constant 0 : index
    %89 = vector.load %arg9[%c1_51, %c0_52, %c0_53] : memref<2x1x128xf32, #tpu.memory_space<vmem>>, vector<1x1x128xf32>
    %90 = vector.shape_cast %89 : vector<1x1x128xf32> to vector<1x128xf32>
    %91 = vector.broadcast %90 : vector<1x128xf32> to vector<8x128xf32>
    %92 = arith.mulf %14, %91 : vector<8x128xf32>
    %cst_54 = arith.constant dense<0.000000e+00> : vector<8xf32>
    %93 = vector.multi_reduction <add>, %92, %cst_54 [1] : vector<8x128xf32> to vector<8xf32>
    %94 = vector.shape_cast %93 : vector<8xf32> to vector<8x1xf32>
    %c1_55 = arith.constant 1 : index
    %c0_56 = arith.constant 0 : index
    %c0_57 = arith.constant 0 : index
    %95 = vector.load %arg10[%c1_55, %c0_56, %c0_57] : memref<2x1x1xf32, #tpu.memory_space<vmem>>, vector<1x1x1xf32>
    %96 = vector.shape_cast %95 : vector<1x1x1xf32> to vector<1x1xf32>
    %97 = vector.broadcast %96 : vector<1x1xf32> to vector<8x1xf32>
    %98 = arith.addf %94, %97 : vector<8x1xf32>
    %cst_58 = arith.constant 6.000000e+00 : f32
    %99 = vector.broadcast %cst_58 : f32 to vector<8x1xf32>
    %100 = arith.subf %98, %99 : vector<8x1xf32>
    %c1_59 = arith.constant 1 : index
    %c0_60 = arith.constant 0 : index
    %c0_61 = arith.constant 0 : index
    %101 = vector.load %arg11[%c1_59, %c0_60, %c0_61] : memref<2x1x128xf32, #tpu.memory_space<vmem>>, vector<1x1x128xf32>
    %102 = vector.shape_cast %101 : vector<1x1x128xf32> to vector<1x128xf32>
    %103 = vector.broadcast %102 : vector<1x128xf32> to vector<8x128xf32>
    %104 = arith.mulf %14, %103 : vector<8x128xf32>
    %cst_62 = arith.constant dense<0.000000e+00> : vector<8xf32>
    %105 = vector.multi_reduction <add>, %104, %cst_62 [1] : vector<8x128xf32> to vector<8xf32>
    %106 = vector.shape_cast %105 : vector<8xf32> to vector<8x1xf32>
    %c1_63 = arith.constant 1 : index
    %c0_64 = arith.constant 0 : index
    %c0_65 = arith.constant 0 : index
    %107 = vector.load %arg12[%c1_63, %c0_64, %c0_65] : memref<2x1x1xf32, #tpu.memory_space<vmem>>, vector<1x1x1xf32>
    %108 = vector.shape_cast %107 : vector<1x1x1xf32> to vector<1x1xf32>
    %109 = vector.broadcast %108 : vector<1x1xf32> to vector<8x1xf32>
    %110 = arith.addf %106, %109 : vector<8x1xf32>
    %cst_66 = arith.constant 6.000000e+00 : f32
    %111 = vector.broadcast %cst_66 : f32 to vector<8x1xf32>
    %112 = arith.subf %110, %111 : vector<8x1xf32>
    %113 = math.exp %100 : vector<8x1xf32>
    %cst_67 = arith.constant 0.000000e+00 : f32
    %114 = vector.broadcast %cst_67 : f32 to vector<8x1xf32>
    %115 = arith.maximumf %112, %114 : vector<8x1xf32>
    %116 = math.absf %112 : vector<8x1xf32>
    %cst_68 = arith.constant 0.000000e+00 : f32
    %117 = vector.broadcast %cst_68 : f32 to vector<8x1xf32>
    %118 = arith.subf %117, %116 : vector<8x1xf32>
    %119 = math.exp %118 : vector<8x1xf32>
    %120 = math.log1p %119 : vector<8x1xf32>
    %121 = arith.addf %115, %120 : vector<8x1xf32>
    %122 = arith.subf %121, %113 : vector<8x1xf32>
    %123 = arith.subf %69, %88 : vector<8x4xf32>
    %124 = arith.mulf %123, %123 : vector<8x4xf32>
    %cst_69 = arith.constant dense<0.000000e+00> : vector<8xf32>
    %125 = vector.multi_reduction <add>, %124, %cst_69 [1] : vector<8x4xf32> to vector<8xf32>
    %126 = vector.shape_cast %125 : vector<8xf32> to vector<8x1xf32>
    %127 = math.sqrt %126 : vector<8x1xf32>
    %128 = arith.addf %113, %127 : vector<8x1xf32>
    %cst_70 = arith.constant 1.000000e+00 : f32
    %129 = vector.broadcast %cst_70 : f32 to vector<8x1xf32>
    %130 = arith.divf %129, %128 : vector<8x1xf32>
    %131 = arith.mulf %122, %130 : vector<8x1xf32>
    %132 = vector.broadcast %131 : vector<8x1xf32> to vector<8x4xf32>
    %133 = arith.mulf %132, %123 : vector<8x4xf32>
    %134 = arith.addf %69, %133 : vector<8x4xf32>
    %135 = math.log1p %131 : vector<8x1xf32>
    %cst_71 = arith.constant 3.000000e+00 : f32
    %136 = vector.broadcast %cst_71 : f32 to vector<8x1xf32>
    %137 = arith.mulf %136, %135 : vector<8x1xf32>
    %cst_72 = arith.constant 1.000000e+00 : f32
    %138 = vector.broadcast %cst_72 : f32 to vector<8x1xf32>
    %139 = arith.addf %138, %131 : vector<8x1xf32>
    %140 = arith.mulf %122, %127 : vector<8x1xf32>
    %141 = arith.mulf %128, %128 : vector<8x1xf32>
    %142 = arith.divf %140, %141 : vector<8x1xf32>
    %143 = arith.subf %139, %142 : vector<8x1xf32>
    %144 = math.log %143 : vector<8x1xf32>
    %145 = arith.addf %137, %144 : vector<8x1xf32>
    %146 = arith.subf %81, %145 : vector<8x1xf32>
    %c0_73 = arith.constant 0 : index
    %c0_74 = arith.constant 0 : index
    %147 = vector.load %arg13[%c0_73, %c0_74] : memref<8x4xf32, #tpu.memory_space<vmem>>, vector<8x4xf32>
    tpu.vector_store %arg13[%c0_73, %c0_74], %134 {strides = array<i32>} : memref<8x4xf32, #tpu.memory_space<vmem>>, vector<8x4xf32>,
    %c0_75 = arith.constant 0 : index
    %c0_76 = arith.constant 0 : index
    %148 = vector.load %arg14[%c0_75, %c0_76] : memref<8x1xf32, #tpu.memory_space<vmem>>, vector<8x1xf32>
    tpu.vector_store %arg14[%c0_75, %c0_76], %146 {strides = array<i32>} : memref<8x1xf32, #tpu.memory_space<vmem>>, vector<8x1xf32>,
    return
  }
}

</mosaic_0001>

<llo_original>
// kernel: hypernetwork_radial_flow.1
$region0: #{hypernetwork_radial_flow.1}
  #allocation0 [shape = 'u32[]', space=smem, size = 0x4, offset = 0x4, fixed_abs, tag = 'smem constant byte address 0x4 - core index']
  #allocation1 [shape = 'u32[144,128]{1,0:T(1,128)}', space=vmem, size = 0x12000, scoped, tag = 'internal scratch']
  %s0 = inlined_call_operand.vmem [shape: f32[8,16], index: 0, kind: input, shape index: {}]
  %s1 = inlined_call_operand.vmem [shape: f32[8,4], index: 1, kind: input, shape index: {}]
  %s2 = inlined_call_operand.vmem [shape: f32[8,1], index: 2, kind: input, shape index: {}]
  %s3 = inlined_call_operand.vmem [shape: f32[16,128], index: 3, kind: input, shape index: {}]
  %s4 = inlined_call_operand.vmem [shape: f32[1,128], index: 4, kind: input, shape index: {}]
  %s5 = inlined_call_operand.vmem [shape: f32[128,128], index: 5, kind: input, shape index: {}]
  %s6 = inlined_call_operand.vmem [shape: f32[1,128], index: 6, kind: input, shape index: {}]
  %s7 = inlined_call_operand.vmem [shape: f32[2,128,4], index: 7, kind: input, shape index: {}]
  %s8 = inlined_call_operand.vmem [shape: f32[2,1,4], index: 8, kind: input, shape index: {}]
  %s9 = inlined_call_operand.vmem [shape: f32[2,1,128], index: 9, kind: input, shape index: {}]
  %s10 = inlined_call_operand.vmem [shape: f32[2,1,1], index: 10, kind: input, shape index: {}]
  %s11 = inlined_call_operand.vmem [shape: f32[2,1,128], index: 11, kind: input, shape index: {}]
  %s12 = inlined_call_operand.vmem [shape: f32[2,1,1], index: 12, kind: input, shape index: {}]
  %s13 = inlined_call_operand.vmem [shape: f32[8,4], index: 13, kind: output, shape index: {0}]
  %s14 = inlined_call_operand.vmem [shape: f32[8,1], index: 14, kind: output, shape index: {1}]
  %15 = xla_tuple %s13, %s14
  %s16 = sld [smem:[#allocation0]]
  $region70: #{hypernetwork_radial_flow.1} parent=0
    _
  %s18 = ssub.s32 1, %s16
  %s19 = scalar_select 0, %s18, %s16
  // Predicated region
  $region2: #{hypernetwork_radial_flow.1} parent=0 // pred_check
    _
  $region3: #{hypernetwork_radial_flow.1} parent=0 // pred_check_branch
    %21 = sbr.rel (0) target = $region5
  $region4: #{hypernetwork_radial_flow.1} parent=0 // pred_region
    _
  $region5: #{hypernetwork_radial_flow.1} parent=0 // pred_fallthru
    _
  // Predicated region
  $region6: #{hypernetwork_radial_flow.1} parent=0 // pred_check
    _
  $region7: #{hypernetwork_radial_flow.1} parent=0 // pred_check_branch
    %23 = sbr.rel (0) target = $region9
  $region8: #{hypernetwork_radial_flow.1} parent=0 // pred_region
    _
  $region9: #{hypernetwork_radial_flow.1} parent=0 // pred_fallthru
    _
  // Predicated region
  $region10: #{hypernetwork_radial_flow.1} parent=0 // pred_check
    _
  $region11: #{hypernetwork_radial_flow.1} parent=0 // pred_check_branch
    %25 = sbr.rel (0) target = $region13
  $region12: #{hypernetwork_radial_flow.1} parent=0 // pred_region
    _
  $region13: #{hypernetwork_radial_flow.1} parent=0 // pred_fallthru
    _
  // Predicated region
  $region14: #{hypernetwork_radial_flow.1} parent=0 // pred_check
    _
  $region15: #{hypernetwork_radial_flow.1} parent=0 // pred_check_branch
    %27 = sbr.rel (0) target = $region17
  $region16: #{hypernetwork_radial_flow.1} parent=0 // pred_region
    _
  $region17: #{hypernetwork_radial_flow.1} parent=0 // pred_fallthru
    _
  // Predicated region
  $region18: #{hypernetwork_radial_flow.1} parent=0 // pred_check
    _
  $region19: #{hypernetwork_radial_flow.1} parent=0 // pred_check_branch
    %29 = sbr.rel (0) target = $region21
  $region20: #{hypernetwork_radial_flow.1} parent=0 // pred_region
    _
  $region21: #{hypernetwork_radial_flow.1} parent=0 // pred_fallthru
    _
  // Predicated region
  $region22: #{hypernetwork_radial_flow.1} parent=0 // pred_check
    _
  $region23: #{hypernetwork_radial_flow.1} parent=0 // pred_check_branch
    %31 = sbr.rel (0) target = $region25
  $region24: #{hypernetwork_radial_flow.1} parent=0 // pred_region
    _
  $region25: #{hypernetwork_radial_flow.1} parent=0 // pred_fallthru
    _
  // Predicated region
  $region26: #{hypernetwork_radial_flow.1} parent=0 // pred_check
    _
  $region27: #{hypernetwork_radial_flow.1} parent=0 // pred_check_branch
    %33 = sbr.rel (0) target = $region29
  $region28: #{hypernetwork_radial_flow.1} parent=0 // pred_region
    _
  $region29: #{hypernetwork_radial_flow.1} parent=0 // pred_fallthru
    _
  // Predicated region
  $region30: #{hypernetwork_radial_flow.1} parent=0 // pred_check
    _
  $region31: #{hypernetwork_radial_flow.1} parent=0 // pred_check_branch
    %35 = sbr.rel (0) target = $region33
  $region32: #{hypernetwork_radial_flow.1} parent=0 // pred_region
    _
  $region33: #{hypernetwork_radial_flow.1} parent=0 // pred_fallthru
    _
  // Predicated region
  $region34: #{hypernetwork_radial_flow.1} parent=0 // pred_check
    _
  $region35: #{hypernetwork_radial_flow.1} parent=0 // pred_check_branch
    %37 = sbr.rel (0) target = $region37
  $region36: #{hypernetwork_radial_flow.1} parent=0 // pred_region
    _
  $region37: #{hypernetwork_radial_flow.1} parent=0 // pred_fallthru
    _
  // Predicated region
  $region38: #{hypernetwork_radial_flow.1} parent=0 // pred_check
    _
  $region39: #{hypernetwork_radial_flow.1} parent=0 // pred_check_branch
    %39 = sbr.rel (0) target = $region41
  $region40: #{hypernetwork_radial_flow.1} parent=0 // pred_region
    _
  $region41: #{hypernetwork_radial_flow.1} parent=0 // pred_fallthru
    _
  // Predicated region
  $region42: #{hypernetwork_radial_flow.1} parent=0 // pred_check
    _
  $region43: #{hypernetwork_radial_flow.1} parent=0 // pred_check_branch
    %41 = sbr.rel (0) target = $region45
  $region44: #{hypernetwork_radial_flow.1} parent=0 // pred_region
    _
  $region45: #{hypernetwork_radial_flow.1} parent=0 // pred_fallthru
    _
  // Predicated region
  $region46: #{hypernetwork_radial_flow.1} parent=0 // pred_check
    _
  $region47: #{hypernetwork_radial_flow.1} parent=0 // pred_check_branch
    %43 = sbr.rel (0) target = $region49
  $region48: #{hypernetwork_radial_flow.1} parent=0 // pred_region
    _
  $region49: #{hypernetwork_radial_flow.1} parent=0 // pred_fallthru
    _
  // Predicated region
  $region50: #{hypernetwork_radial_flow.1} parent=0 // pred_check
    _
  $region51: #{hypernetwork_radial_flow.1} parent=0 // pred_check_branch
    %45 = sbr.rel (0) target = $region53
  $region52: #{hypernetwork_radial_flow.1} parent=0 // pred_region
    _
  $region53: #{hypernetwork_radial_flow.1} parent=0 // pred_fallthru
    _
  %v46 = vld [vmem:[%s0] sm:$0xff]
  %v47 = vld [vmem:[%s3] sm:$0xff]
  %v48 = vld [vmem:[%s3 + $0x8] sm:$0xff]
  %v49 = vld [vmem:[%s4] sm:$0x1]
  %v51 = vlaneseq
  %v52 = vshrl.u32 %v51, 7
  %v53 = vsub.s32 0, %v52
  %v54 = vrot.slane %v49, %v53
  %vm56 = vcmask 130048
  %v58 = vsel %vm56, %v46, 0
  %60 = vmatprep.subr.mxu0 0.0
  %61 = vmatpush1.msra.mxu0 %v47
  %62 = vmatprep.subr.mxu0 0.0
  %63 = vmatpush1.msra.mxu0 %v48
  %64 = vmatprep.subr.mxu0 0.0
  %65 = vmatpush1.msra.mxu0 0.0
  %66 = vmatprep.subr.mxu0 0.0
  %67 = vmatpush1.msra.mxu0 0.0
  %68 = vmatprep.subr.mxu0 0.0
  %69 = vmatpush1.msra.mxu0 0.0
  %70 = vmatprep.subr.mxu0 0.0
  %71 = vmatpush1.msra.mxu0 0.0
  %72 = vmatprep.subr.mxu0 0.0
  %73 = vmatpush1.msra.mxu0 0.0
  %74 = vmatprep.subr.mxu0 0.0
  %75 = vmatpush1.msra.mxu0 0.0
  %76 = vmatprep.subr.mxu0 0.0
  %77 = vmatpush1.msra.mxu0 0.0
  %78 = vmatprep.subr.mxu0 0.0
  %79 = vmatpush1.msra.mxu0 0.0
  %80 = vmatprep.subr.mxu0 0.0
  %81 = vmatpush1.msra.mxu0 0.0
  %82 = vmatprep.subr.mxu0 0.0
  %83 = vmatpush1.msra.mxu0 0.0
  %84 = vmatprep.subr.mxu0 0.0
  %85 = vmatpush1.msra.mxu0 0.0
  %86 = vmatprep.subr.mxu0 0.0
  %87 = vmatpush1.msra.mxu0 0.0
  %88 = vmatprep.subr.mxu0 0.0
  %89 = vmatpush1.msra.mxu0 0.0
  %90 = vmatprep.subr.mxu0 0.0
  %91 = vmatpush1.msra.mxu0 0.0
  %92 = vmatprep.subr.mxu0 0.0
  %93 = vmatpush1.msra.mxu0 0.0
  %94 = vmatprep.subr.mxu0 0.0
  %95 = vmatpush1.msra.mxu0 0.0
  %96 = vmatprep.subr.mxu0 0.0
  %97 = vmatpush1.msra.mxu0 0.0
  %98 = vmatprep.subr.mxu0 0.0
  %99 = vmatpush1.msra.mxu0 0.0
  %100 = vmatprep.subr.mxu0 0.0
  %101 = vmatpush1.msra.mxu0 0.0
  %102 = vmatprep.subr.mxu0 0.0
  %103 = vmatpush1.msra.mxu0 0.0
  %104 = vmatprep.subr.mxu0 0.0
  %105 = vmatpush1.msra.mxu0 0.0
  %106 = vmatprep.subr.mxu0 0.0
  %107 = vmatpush1.msra.mxu0 0.0
  %108 = vmatprep.subr.mxu0 0.0
  %109 = vmatpush1.msra.mxu0 0.0
  %110 = vmatprep.subr.mxu0 0.0
  %111 = vmatpush1.msra.mxu0 0.0
  %112 = vmatprep.subr.mxu0 0.0
  %113 = vmatpush1.msra.mxu0 0.0
  %114 = vmatprep.subr.mxu0 0.0
  %115 = vmatpush1.msra.mxu0 0.0
  %116 = vmatprep.subr.mxu0 0.0
  %117 = vmatpush1.msra.mxu0 0.0
  %118 = vmatprep.subr.mxu0 0.0
  %119 = vmatpush1.msra.mxu0 0.0
  %120 = vmatprep.subr.mxu0 0.0
  %121 = vmatpush1.msra.mxu0 0.0
  %122 = vmatprep.subr.mxu0 0.0
  %123 = vmatpush1.msra.mxu0 0.0
  %124 = vmatprep.mubr.f32.mxu0 0.0
  %125 = vmatmul.mubr.f32.gmra.mrb[0].mxu0 %v58
  %v126 = vpop.f32.mrb[0].mxu0
  %v127 = vadd.f32 %v54, %v126
  %v128 = vpop.f32.mrb[0].mxu0
  %129 = vdwg.mxu0
  %v130 = vmax.f32 %v127, 0.0
  %v131 = vld [vmem:[%s5] sm:$0xff]
  %v132 = vld [vmem:[%s5 + $0x8] sm:$0xff]
  %v133 = vld [vmem:[%s5 + $0x10] sm:$0xff]
  %v134 = vld [vmem:[%s5 + $0x18] sm:$0xff]
  %v135 = vld [vmem:[%s5 + $0x20] sm:$0xff]
  %v136 = vld [vmem:[%s5 + $0x28] sm:$0xff]
  %v137 = vld [vmem:[%s5 + $0x30] sm:$0xff]
  %v138 = vld [vmem:[%s5 + $0x38] sm:$0xff]
  %v139 = vld [vmem:[%s5 + $0x40] sm:$0xff]
  %v140 = vld [vmem:[%s5 + $0x48] sm:$0xff]
  %v141 = vld [vmem:[%s5 + $0x50] sm:$0xff]
  %v142 = vld [vmem:[%s5 + $0x58] sm:$0xff]
  %v143 = vld [vmem:[%s5 + $0x60] sm:$0xff]
  %v144 = vld [vmem:[%s5 + $0x68] sm:$0xff]
  %v145 = vld [vmem:[%s5 + $0x70] sm:$0xff]
  %v146 = vld [vmem:[%s5 + $0x78] sm:$0xff]
  %v147 = vld [vmem:[%s6] sm:$0x1]
  %v149 = vlaneseq
  %v150 = vshrl.u32 %v149, 7
  %v151 = vsub.s32 0, %v150
  %v152 = vrot.slane %v147, %v151
  %154 = vmatprep.subr.mxu0 0.0
  %155 = vmatpush1.msra.mxu0 %v131
  %156 = vmatprep.subr.mxu0 0.0
  %157 = vmatpush1.msra.mxu0 %v132
  %158 = vmatprep.subr.mxu0 0.0
  %159 = vmatpush1.msra.mxu0 %v133
  %160 = vmatprep.subr.mxu0 0.0
  %161 = vmatpush1.msra.mxu0 %v134
  %162 = vmatprep.subr.mxu0 0.0
  %163 = vmatpush1.msra.mxu0 %v135
  %164 = vmatprep.subr.mxu0 0.0
  %165 = vmatpush1.msra.mxu0 %v136
  %166 = vmatprep.subr.mxu0 0.0
  %167 = vmatpush1.msra.mxu0 %v137
  %168 = vmatprep.subr.mxu0 0.0
  %169 = vmatpush1.msra.mxu0 %v138
  %170 = vmatprep.subr.mxu0 0.0
  %171 = vmatpush1.msra.mxu0 %v139
  %172 = vmatprep.subr.mxu0 0.0
  %173 = vmatpush1.msra.mxu0 %v140
  %174 = vmatprep.subr.mxu0 0.0
  %175 = vmatpush1.msra.mxu0 %v141
  %176 = vmatprep.subr.mxu0 0.0
  %177 = vmatpush1.msra.mxu0 %v142
  %178 = vmatprep.subr.mxu0 0.0
  %179 = vmatpush1.msra.mxu0 %v143
  %180 = vmatprep.subr.mxu0 0.0
  %181 = vmatpush1.msra.mxu0 %v144
  %182 = vmatprep.subr.mxu0 0.0
  %183 = vmatpush1.msra.mxu0 %v145
  %184 = vmatprep.subr.mxu0 0.0
  %185 = vmatpush1.msra.mxu0 %v146
  %186 = vmatprep.subr.mxu0 0.0
  %187 = vmatpush1.msra.mxu0 0.0
  %188 = vmatprep.subr.mxu0 0.0
  %189 = vmatpush1.msra.mxu0 0.0
  %190 = vmatprep.subr.mxu0 0.0
  %191 = vmatpush1.msra.mxu0 0.0
  %192 = vmatprep.subr.mxu0 0.0
  %193 = vmatpush1.msra.mxu0 0.0
  %194 = vmatprep.subr.mxu0 0.0
  %195 = vmatpush1.msra.mxu0 0.0
  %196 = vmatprep.subr.mxu0 0.0
  %197 = vmatpush1.msra.mxu0 0.0
  %198 = vmatprep.subr.mxu0 0.0
  %199 = vmatpush1.msra.mxu0 0.0
  %200 = vmatprep.subr.mxu0 0.0
  %201 = vmatpush1.msra.mxu0 0.0
  %202 = vmatprep.subr.mxu0 0.0
  %203 = vmatpush1.msra.mxu0 0.0
  %204 = vmatprep.subr.mxu0 0.0
  %205 = vmatpush1.msra.mxu0 0.0
  %206 = vmatprep.subr.mxu0 0.0
  %207 = vmatpush1.msra.mxu0 0.0
  %208 = vmatprep.subr.mxu0 0.0
  %209 = vmatpush1.msra.mxu0 0.0
  %210 = vmatprep.subr.mxu0 0.0
  %211 = vmatpush1.msra.mxu0 0.0
  %212 = vmatprep.subr.mxu0 0.0
  %213 = vmatpush1.msra.mxu0 0.0
  %214 = vmatprep.subr.mxu0 0.0
  %215 = vmatpush1.msra.mxu0 0.0
  %216 = vmatprep.subr.mxu0 0.0
  %217 = vmatpush1.msra.mxu0 0.0
  %218 = vmatprep.mubr.f32.mxu0 0.0
  %219 = vmatmul.mubr.f32.gmra.mrb[0].mxu0 %v130
  %v220 = vpop.f32.mrb[0].mxu0
  %v221 = vadd.f32 %v152, %v220
  %v222 = vpop.f32.mrb[0].mxu0
  %223 = vdwg.mxu0
  %v224 = vmax.f32 %v221, 0.0
  %v225 = vld [vmem:[%s1] sm:$0xff]
  %v226 = vld [vmem:[%s2] sm:$0xff]
  %v227 = vld [vmem:[%s7] sm:$0xff]
  %v228 = vld [vmem:[%s7 + $0x8] sm:$0xff]
  %v229 = vld [vmem:[%s7 + $0x10] sm:$0xff]
  %v230 = vld [vmem:[%s7 + $0x18] sm:$0xff]
  %v231 = vld [vmem:[%s7 + $0x20] sm:$0xff]
  %v232 = vld [vmem:[%s7 + $0x28] sm:$0xff]
  %v233 = vld [vmem:[%s7 + $0x30] sm:$0xff]
  %v234 = vld [vmem:[%s7 + $0x38] sm:$0xff]
  %v235 = vld [vmem:[%s7 + $0x40] sm:$0xff]
  %v236 = vld [vmem:[%s7 + $0x48] sm:$0xff]
  %v237 = vld [vmem:[%s7 + $0x50] sm:$0xff]
  %v238 = vld [vmem:[%s7 + $0x58] sm:$0xff]
  %v239 = vld [vmem:[%s7 + $0x60] sm:$0xff]
  %v240 = vld [vmem:[%s7 + $0x68] sm:$0xff]
  %v241 = vld [vmem:[%s7 + $0x70] sm:$0xff]
  %v242 = vld [vmem:[%s7 + $0x78] sm:$0xff]
  %v243 = vld [vmem:[%s8] sm:$0x1]
  %v245 = vlaneseq
  %v246 = vshrl.u32 %v245, 7
  %v247 = vsub.s32 0, %v246
  %v248 = vrot.slane %v243, %v247
  %250 = vmatprep.subr.mxu0 0.0
  %251 = vmatpush1.msra.mxu0 %v227
  %252 = vmatprep.subr.mxu0 0.0
  %253 = vmatpush1.msra.mxu0 %v228
  %254 = vmatprep.subr.mxu0 0.0
  %255 = vmatpush1.msra.mxu0 %v229
  %256 = vmatprep.subr.mxu0 0.0
  %257 = vmatpush1.msra.mxu0 %v230
  %258 = vmatprep.subr.mxu0 0.0
  %259 = vmatpush1.msra.mxu0 %v231
  %260 = vmatprep.subr.mxu0 0.0
  %261 = vmatpush1.msra.mxu0 %v232
  %262 = vmatprep.subr.mxu0 0.0
  %263 = vmatpush1.msra.mxu0 %v233
  %264 = vmatprep.subr.mxu0 0.0
  %265 = vmatpush1.msra.mxu0 %v234
  %266 = vmatprep.subr.mxu0 0.0
  %267 = vmatpush1.msra.mxu0 %v235
  %268 = vmatprep.subr.mxu0 0.0
  %269 = vmatpush1.msra.mxu0 %v236
  %270 = vmatprep.subr.mxu0 0.0
  %271 = vmatpush1.msra.mxu0 %v237
  %272 = vmatprep.subr.mxu0 0.0
  %273 = vmatpush1.msra.mxu0 %v238
  %274 = vmatprep.subr.mxu0 0.0
  %275 = vmatpush1.msra.mxu0 %v239
  %276 = vmatprep.subr.mxu0 0.0
  %277 = vmatpush1.msra.mxu0 %v240
  %278 = vmatprep.subr.mxu0 0.0
  %279 = vmatpush1.msra.mxu0 %v241
  %280 = vmatprep.subr.mxu0 0.0
  %281 = vmatpush1.msra.mxu0 %v242
  %282 = vmatprep.subr.mxu0 0.0
  %283 = vmatpush1.msra.mxu0 0.0
  %284 = vmatprep.subr.mxu0 0.0
  %285 = vmatpush1.msra.mxu0 0.0
  %286 = vmatprep.subr.mxu0 0.0
  %287 = vmatpush1.msra.mxu0 0.0
  %288 = vmatprep.subr.mxu0 0.0
  %289 = vmatpush1.msra.mxu0 0.0
  %290 = vmatprep.subr.mxu0 0.0
  %291 = vmatpush1.msra.mxu0 0.0
  %292 = vmatprep.subr.mxu0 0.0
  %293 = vmatpush1.msra.mxu0 0.0
  %294 = vmatprep.subr.mxu0 0.0
  %295 = vmatpush1.msra.mxu0 0.0
  %296 = vmatprep.subr.mxu0 0.0
  %297 = vmatpush1.msra.mxu0 0.0
  %298 = vmatprep.subr.mxu0 0.0
  %299 = vmatpush1.msra.mxu0 0.0
  %300 = vmatprep.subr.mxu0 0.0
  %301 = vmatpush1.msra.mxu0 0.0
  %302 = vmatprep.subr.mxu0 0.0
  %303 = vmatpush1.msra.mxu0 0.0
  %304 = vmatprep.subr.mxu0 0.0
  %305 = vmatpush1.msra.mxu0 0.0
  %306 = vmatprep.subr.mxu0 0.0
  %307 = vmatpush1.msra.mxu0 0.0
  %308 = vmatprep.subr.mxu0 0.0
  %309 = vmatpush1.msra.mxu0 0.0
  %310 = vmatprep.subr.mxu0 0.0
  %311 = vmatpush1.msra.mxu0 0.0
  %312 = vmatprep.subr.mxu0 0.0
  %313 = vmatpush1.msra.mxu0 0.0
  %314 = vmatprep.mubr.f32.mxu0 0.0
  %315 = vmatmul.mubr.f32.gmra.mrb[0].mxu0 %v224
  %v316 = vpop.f32.mrb[0].mxu0
  %v317 = vadd.f32 %v248, %v316
  %v318 = vpop.f32.mrb[0].mxu0
  %319 = vdwg.mxu0
  %v320 = vld [vmem:[%s9] sm:$0x1]
  %v322 = vlaneseq
  %v323 = vshrl.u32 %v322, 7
  %v324 = vsub.s32 0, %v323
  %v325 = vrot.slane %v320, %v324
  %v327 = vmul.f32 %v224, %v325
  %328 = vadd.xlane.f32.xlu0 %v327
  %v329 = vpop.xlane.xlu0 %328
  %v330 = vld [vmem:[%s10] sm:$0x1]
  %v332 = vlaneseq
  %v333 = vshrl.u32 %v332, 7
  %v334 = vsub.s32 0, %v333
  %v335 = vrot.slane %v330, %v334
  %v337 = vadd.f32 %v329, %v335
  %v338 = vsub.f32 %v337, 6.0
  %v339 = vld [vmem:[%s11] sm:$0x1]
  %v341 = vlaneseq
  %v342 = vshrl.u32 %v341, 7
  %v343 = vsub.s32 0, %v342
  %v344 = vrot.slane %v339, %v343
  %v346 = vmul.f32 %v224, %v344
  %347 = vadd.xlane.f32.xlu0 %v346
  %v348 = vpop.xlane.xlu0 %347
  %v349 = vld [vmem:[%s12] sm:$0x1]
  %v351 = vlaneseq
  %v352 = vshrl.u32 %v351, 7
  %v353 = vsub.s32 0, %v352
  %v354 = vrot.slane %v349, %v353
  %v356 = vadd.f32 %v348, %v354
  %v357 = vsub.f32 %v356, 6.0
  %v358 = vmul.f32 %v338, 1.442695
  %v359 = vpow.pop %v358
  %v360 = vmax.f32 %v357, 0.0
  %v361 = vand.u32 2147483647, %v357
  %v362 = vsub.f32 0.0, %v361
  %v363 = vmul.f32 %v362, 1.442695
  %v364 = vpow.pop %v363
  %v365 = vadd.f32 %v364, 1.0
  %v366 = vlog2.pop %v365
  %v367 = vmul.f32 %v366, 0.6931472
  %v368 = vmul.f32 -0.5, %v364
  %v369 = vadd.f32 %v368, 1.0
  %v370 = vmul.f32 %v369, %v364
  %v371 = vand.u32 2147483647, %v364
  %vm372 = vcmp.lt.f32.partialorder %v371, 0.0004427343
  %v373 = vsel %vm372, %v370, %v367
  %v374 = vadd.f32 %v360, %v373
  %v375 = vsub.f32 %v374, %v359
  %v376 = vsub.f32 %v225, %v317
  %v377 = vmul.f32 %v376, %v376
  %vm378 = vcmask 31744
  %v379 = vsel %vm378, %v377, 0.0
  %380 = vadd.xlane.f32.xlu0 %v379
  %v381 = vpop.xlane.xlu0 %380
  %v382 = vrsqrt.pop %v381
  %v383 = vmul.f32 %v381, %v382
  %vm384 = vcmp.eq.f32.partialorder %v381, inf
  %v385 = vsel %vm384, %v381, %v383
  %vm386 = vcmp.eq.f32.partialorder %v381, 0.0
  %v387 = vand.u32 %v381, 2147483648
  %v388 = vsel %vm386, %v387, %v385
  %v389 = vadd.f32 %v359, %v388
  %v390 = vrcp.pop %v389
  %v391 = vmul.f32 1.0, %v390
  %v392 = vmul.f32 %v375, %v391
  %394 = vset.pattern.permute.xlu0 0
  %395 = vperm.xlu0 %394, %v392
  %v396 = vpop.permute.xlu0 %395
  %v398 = vmul.f32 %v396, %v376
  %v399 = vadd.f32 %v225, %v398
  %v400 = vadd.f32 %v392, 1.0
  %v401 = vlog2.pop %v400
  %v402 = vmul.f32 %v401, 0.6931472
  %v403 = vmul.f32 -0.5, %v392
  %v404 = vadd.f32 %v403, 1.0
  %v405 = vmul.f32 %v404, %v392
  %v406 = vand.u32 2147483647, %v392
  %vm407 = vcmp.lt.f32.partialorder %v406, 0.0004427343
  %v408 = vsel %vm407, %v405, %v402
  %v409 = vmul.f32 %v408, 3.0
  %v410 = vadd.f32 %v392, 1.0
  %v411 = vmul.f32 %v375, %v388
  %v412 = vmul.f32 %v389, %v389
  %v413 = vrcp.pop %v412
  %v414 = vmul.f32 %v411, %v413
  %v415 = vsub.f32 %v410, %v414
  %v416 = vlog2.pop %v415
  %v417 = vmul.f32 %v416, 0.6931472
  %v418 = vadd.f32 %v409, %v417
  %v419 = vsub.f32 %v226, %v418
  %s420 = scalar_lea.vmem %s7, 128
  %v421 = vld [vmem:[%s420] sm:$0xff]
  %v422 = vld [vmem:[%s420 + $0x8] sm:$0xff]
  %v423 = vld [vmem:[%s420 + $0x10] sm:$0xff]
  %v424 = vld [vmem:[%s420 + $0x18] sm:$0xff]
  %v425 = vld [vmem:[%s420 + $0x20] sm:$0xff]
  %v426 = vld [vmem:[%s420 + $0x28] sm:$0xff]
  %v427 = vld [vmem:[%s420 + $0x30] sm:$0xff]
  %v428 = vld [vmem:[%s420 + $0x38] sm:$0xff]
  %v429 = vld [vmem:[%s420 + $0x40] sm:$0xff]
  %v430 = vld [vmem:[%s420 + $0x48] sm:$0xff]
  %v431 = vld [vmem:[%s420 + $0x50] sm:$0xff]
  %v432 = vld [vmem:[%s420 + $0x58] sm:$0xff]
  %v433 = vld [vmem:[%s420 + $0x60] sm:$0xff]
  %v434 = vld [vmem:[%s420 + $0x68] sm:$0xff]
  %v435 = vld [vmem:[%s420 + $0x70] sm:$0xff]
  %v436 = vld [vmem:[%s420 + $0x78] sm:$0xff]
  %s437 = scalar_lea.vmem %s8, 1
  %v438 = vld [vmem:[%s437] sm:$0x1]
  %v440 = vlaneseq
  %v441 = vshrl.u32 %v440, 7
  %v442 = vsub.s32 0, %v441
  %v443 = vrot.slane %v438, %v442
  %445 = vmatprep.subr.mxu0 0.0
  %446 = vmatpush1.msra.mxu0 %v421
  %447 = vmatprep.subr.mxu0 0.0
  %448 = vmatpush1.msra.mxu0 %v422
  %449 = vmatprep.subr.mxu0 0.0
  %450 = vmatpush1.msra.mxu0 %v423
  %451 = vmatprep.subr.mxu0 0.0
  %452 = vmatpush1.msra.mxu0 %v424
  %453 = vmatprep.subr.mxu0 0.0
  %454 = vmatpush1.msra.mxu0 %v425
  %455 = vmatprep.subr.mxu0 0.0
  %456 = vmatpush1.msra.mxu0 %v426
  %457 = vmatprep.subr.mxu0 0.0
  %458 = vmatpush1.msra.mxu0 %v427
  %459 = vmatprep.subr.mxu0 0.0
  %460 = vmatpush1.msra.mxu0 %v428
  %461 = vmatprep.subr.mxu0 0.0
  %462 = vmatpush1.msra.mxu0 %v429
  %463 = vmatprep.subr.mxu0 0.0
  %464 = vmatpush1.msra.mxu0 %v430
  %465 = vmatprep.subr.mxu0 0.0
  %466 = vmatpush1.msra.mxu0 %v431
  %467 = vmatprep.subr.mxu0 0.0
  %468 = vmatpush1.msra.mxu0 %v432
  %469 = vmatprep.subr.mxu0 0.0
  %470 = vmatpush1.msra.mxu0 %v433
  %471 = vmatprep.subr.mxu0 0.0
  %472 = vmatpush1.msra.mxu0 %v434
  %473 = vmatprep.subr.mxu0 0.0
  %474 = vmatpush1.msra.mxu0 %v435
  %475 = vmatprep.subr.mxu0 0.0
  %476 = vmatpush1.msra.mxu0 %v436
  %477 = vmatprep.subr.mxu0 0.0
  %478 = vmatpush1.msra.mxu0 0.0
  %479 = vmatprep.subr.mxu0 0.0
  %480 = vmatpush1.msra.mxu0 0.0
  %481 = vmatprep.subr.mxu0 0.0
  %482 = vmatpush1.msra.mxu0 0.0
  %483 = vmatprep.subr.mxu0 0.0
  %484 = vmatpush1.msra.mxu0 0.0
  %485 = vmatprep.subr.mxu0 0.0
  %486 = vmatpush1.msra.mxu0 0.0
  %487 = vmatprep.subr.mxu0 0.0
  %488 = vmatpush1.msra.mxu0 0.0
  %489 = vmatprep.subr.mxu0 0.0
  %490 = vmatpush1.msra.mxu0 0.0
  %491 = vmatprep.subr.mxu0 0.0
  %492 = vmatpush1.msra.mxu0 0.0
  %493 = vmatprep.subr.mxu0 0.0
  %494 = vmatpush1.msra.mxu0 0.0
  %495 = vmatprep.subr.mxu0 0.0
  %496 = vmatpush1.msra.mxu0 0.0
  %497 = vmatprep.subr.mxu0 0.0
  %498 = vmatpush1.msra.mxu0 0.0
  %499 = vmatprep.subr.mxu0 0.0
  %500 = vmatpush1.msra.mxu0 0.0
  %501 = vmatprep.subr.mxu0 0.0
  %502 = vmatpush1.msra.mxu0 0.0
  %503 = vmatprep.subr.mxu0 0.0
  %504 = vmatpush1.msra.mxu0 0.0
  %505 = vmatprep.subr.mxu0 0.0
  %506 = vmatpush1.msra.mxu0 0.0
  %507 = vmatprep.subr.mxu0 0.0
  %508 = vmatpush1.msra.mxu0 0.0
  %509 = vmatprep.mubr.f32.mxu0 0.0
  %510 = vmatmul.mubr.f32.gmra.mrb[0].mxu0 %v224
  %v511 = vpop.f32.mrb[0].mxu0
  %v512 = vadd.f32 %v443, %v511
  %v513 = vpop.f32.mrb[0].mxu0
  %514 = vdwg.mxu0
  %s515 = scalar_lea.vmem %s9, 1
  %v516 = vld [vmem:[%s515] sm:$0x1]
  %v518 = vlaneseq
  %v519 = vshrl.u32 %v518, 7
  %v520 = vsub.s32 0, %v519
  %v521 = vrot.slane %v516, %v520
  %v523 = vmul.f32 %v224, %v521
  %524 = vadd.xlane.f32.xlu0 %v523
  %v525 = vpop.xlane.xlu0 %524
  %s526 = scalar_lea.vmem %s10, 1
  %v527 = vld [vmem:[%s526] sm:$0x1]
  %v529 = vlaneseq
  %v530 = vshrl.u32 %v529, 7
  %v531 = vsub.s32 0, %v530
  %v532 = vrot.slane %v527, %v531
  %v534 = vadd.f32 %v525, %v532
  %v535 = vsub.f32 %v534, 6.0
  %s536 = scalar_lea.vmem %s11, 1
  %v537 = vld [vmem:[%s536] sm:$0x1]
  %v539 = vlaneseq
  %v540 = vshrl.u32 %v539, 7
  %v541 = vsub.s32 0, %v540
  %v542 = vrot.slane %v537, %v541
  %v544 = vmul.f32 %v224, %v542
  %545 = vadd.xlane.f32.xlu0 %v544
  %v546 = vpop.xlane.xlu0 %545
  %s547 = scalar_lea.vmem %s12, 1
  %v548 = vld [vmem:[%s547] sm:$0x1]
  %v550 = vlaneseq
  %v551 = vshrl.u32 %v550, 7
  %v552 = vsub.s32 0, %v551
  %v553 = vrot.slane %v548, %v552
  %v555 = vadd.f32 %v546, %v553
  %v556 = vsub.f32 %v555, 6.0
  %v557 = vmul.f32 %v535, 1.442695
  %v558 = vpow.pop %v557
  %v559 = vmax.f32 %v556, 0.0
  %v560 = vand.u32 2147483647, %v556
  %v561 = vsub.f32 0.0, %v560
  %v562 = vmul.f32 %v561, 1.442695
  %v563 = vpow.pop %v562
  %v564 = vadd.f32 %v563, 1.0
  %v565 = vlog2.pop %v564
  %v566 = vmul.f32 %v565, 0.6931472
  %v567 = vmul.f32 -0.5, %v563
  %v568 = vadd.f32 %v567, 1.0
  %v569 = vmul.f32 %v568, %v563
  %v570 = vand.u32 2147483647, %v563
  %vm571 = vcmp.lt.f32.partialorder %v570, 0.0004427343
  %v572 = vsel %vm571, %v569, %v566
  %v573 = vadd.f32 %v559, %v572
  %v574 = vsub.f32 %v573, %v558
  %v575 = vsub.f32 %v399, %v512
  %v576 = vmul.f32 %v575, %v575
  %v577 = vsel %vm378, %v576, 0.0
  %578 = vadd.xlane.f32.xlu0 %v577
  %v579 = vpop.xlane.xlu0 %578
  %v580 = vrsqrt.pop %v579
  %v581 = vmul.f32 %v579, %v580
  %vm582 = vcmp.eq.f32.partialorder %v579, inf
  %v583 = vsel %vm582, %v579, %v581
  %vm584 = vcmp.eq.f32.partialorder %v579, 0.0
  %v585 = vand.u32 %v579, 2147483648
  %v586 = vsel %vm584, %v585, %v583
  %v587 = vadd.f32 %v558, %v586
  %v588 = vrcp.pop %v587
  %v589 = vmul.f32 1.0, %v588
  %v590 = vmul.f32 %v574, %v589
  %592 = vset.pattern.permute.xlu0 0
  %593 = vperm.xlu0 %592, %v590
  %v594 = vpop.permute.xlu0 %593
  %v596 = vmul.f32 %v594, %v575
  %v597 = vadd.f32 %v399, %v596
  %v598 = vadd.f32 %v590, 1.0
  %v599 = vlog2.pop %v598
  %v600 = vmul.f32 %v599, 0.6931472
  %v601 = vmul.f32 -0.5, %v590
  %v602 = vadd.f32 %v601, 1.0
  %v603 = vmul.f32 %v602, %v590
  %v604 = vand.u32 2147483647, %v590
  %vm605 = vcmp.lt.f32.partialorder %v604, 0.0004427343
  %v606 = vsel %vm605, %v603, %v600
  %v607 = vmul.f32 %v606, 3.0
  %v608 = vadd.f32 %v590, 1.0
  %v609 = vmul.f32 %v574, %v586
  %v610 = vmul.f32 %v587, %v587
  %v611 = vrcp.pop %v610
  %v612 = vmul.f32 %v609, %v611
  %v613 = vsub.f32 %v608, %v612
  %v614 = vlog2.pop %v613
  %v615 = vmul.f32 %v614, 0.6931472
  %v616 = vadd.f32 %v607, %v615
  %v617 = vsub.f32 %v419, %v616
  %618 = vst.msk [vmem:[%s13] sm:$0xff] %vm378, %v597
  %vm619 = vcmask 7168
  %620 = vst.msk [vmem:[%s14] sm:$0xff] %vm619, %v617
  // Predicated region
  $region54: #{hypernetwork_radial_flow.1} parent=0 // pred_check
    _
  $region55: #{hypernetwork_radial_flow.1} parent=0 // pred_check_branch
    %622 = sbr.rel (0) target = $region57
  $region56: #{hypernetwork_radial_flow.1} parent=0 // pred_region
    _
  $region57: #{hypernetwork_radial_flow.1} parent=0 // pred_fallthru
    _
  // Predicated region
  $region58: #{hypernetwork_radial_flow.1} parent=0 // pred_check
    _
  $region59: #{hypernetwork_radial_flow.1} parent=0 // pred_check_branch
    %624 = sbr.rel (0) target = $region61
  $region60: #{hypernetwork_radial_flow.1} parent=0 // pred_region
    _
  $region61: #{hypernetwork_radial_flow.1} parent=0 // pred_fallthru
    _
  // Predicated region
  $region62: #{hypernetwork_radial_flow.1} parent=0 // pred_check
    _
  $region63: #{hypernetwork_radial_flow.1} parent=0 // pred_check_branch
    %626 = sbr.rel (0) target = $region65
  $region64: #{hypernetwork_radial_flow.1} parent=0 // pred_region
    _
  $region65: #{hypernetwork_radial_flow.1} parent=0 // pred_fallthru
    _
  // Predicated region
  $region66: #{hypernetwork_radial_flow.1} parent=0 // pred_check
    _
  $region67: #{hypernetwork_radial_flow.1} parent=0 // pred_check_branch
    %628 = sbr.rel (0) target = $region69
  $region68: #{hypernetwork_radial_flow.1} parent=0 // pred_region
    _
  $region69: #{hypernetwork_radial_flow.1} parent=0 // pred_fallthru
    _

</llo_original>
